<compile_context>
chip_gen: v6e
topology: v6e:2x2x1
jax: 0.10.0
libtpu: 0.0.40
codegen_flags: <defaults>
</compile_context>

<pallas_src>
import jax
import jax.numpy as jnp
from jax.experimental import pallas as pl
from jax.experimental.pallas import tpu as pltpu

LANE = 128            # stored output last-dim is kept a multiple of the lane width
_FMA_FC1_MAX_K = 16   # below this contraction depth fc1 skips the MXU entirely


def dqn_kernel(x_ref, w1_ref, b1_ref, w2_ref, b2_ref, w3_ref, b3_ref,
               w4_ref, b4_ref, o_ref):
    """Fused 4-layer MLP on one batch tile; all weights resident in VMEM.

    fc2..fc4 run bf16 operands on the MXU with f32 accumulation; bias-add and
    ReLU stay in f32 on the VPU (v5e's VPU has no bf16). fc1 with a tiny
    contraction (state_dim ~ 4) is done as VPU broadcast-FMAs.
    """
    x = x_ref[...]                                # (tile, state_dim) f32
    tile, state_dim = x_ref.shape

    if state_dim <= _FMA_FC1_MAX_K:
        # A K=4 matmul would waste an almost-empty MXU pass and 124/128 lanes
        # of the LHS vregs; 4 broadcast multiply-adds on the VPU are cheaper.
        w1 = w1_ref[...]                          # (state_dim, 512) f32
        h = jnp.broadcast_to(b1_ref[...], (tile, w1_ref.shape[1]))
        for k in range(state_dim):                # static unroll at trace time
            h = h + x[:, k:k + 1] * w1[k:k + 1, :]
    else:
        h = jnp.dot(x.astype(jnp.bfloat16), w1_ref[...].astype(jnp.bfloat16),
                    preferred_element_type=jnp.float32) + b1_ref[...]
    h = jnp.maximum(h, 0.0)

    h = jnp.dot(h.astype(jnp.bfloat16), w2_ref[...],
                preferred_element_type=jnp.float32) + b2_ref[...]
    h = jnp.maximum(h, 0.0)

    h = jnp.dot(h.astype(jnp.bfloat16), w3_ref[...],
                preferred_element_type=jnp.float32) + b3_ref[...]
    h = jnp.maximum(h, 0.0)

    out = jnp.dot(h.astype(jnp.bfloat16), w4_ref[...],
                  preferred_element_type=jnp.float32) + b4_ref[...]
    o_ref[...] = out.astype(o_ref.dtype)


def prepare_params(params):
    """One-time (init-time) parameter prep — keep OUT of the per-step hot path.

    * fc2/fc3/fc4 weights -> bf16 (MXU-native operands, half the DMA bytes).
    * fc1 weight stays f32 (the kernel computes fc1 on the VPU).
    * fc4 weight/bias zero-padded to a lane-dense 128-wide output.
    * biases -> (1, out) f32.
    """
    action_dim = params["w4"].shape[1]
    out_dim = max(LANE, ((action_dim + LANE - 1) // LANE) * LANE)

    w4 = params["w4"].astype(jnp.bfloat16)
    w4p = jnp.zeros((w4.shape[0], out_dim), jnp.bfloat16).at[:, :action_dim].set(w4)
    b4p = jnp.zeros((1, out_dim), jnp.float32).at[:, :action_dim].set(
        params["b4"].reshape(1, -1).astype(jnp.float32))

    return {
        "w1": params["w1"].astype(jnp.float32),
        "b1": params["b1"].reshape(1, -1).astype(jnp.float32),
        "w2": params["w2"].astype(jnp.bfloat16),
        "b2": params["b2"].reshape(1, -1).astype(jnp.float32),
        "w3": params["w3"].astype(jnp.bfloat16),
        "b3": params["b3"].reshape(1, -1).astype(jnp.float32),
        "w4p": w4p,
        "b4p": b4p,
    }


def _pick_batch_tile(batch):
    if batch <= 256:
        return batch      # single grid step: no per-step pipeline overhead
    if batch < 2048:
        return 256        # fills the 256-row MXU; >=2 steps for v7x megacore
    return 512            # amortize ~0.35us/step overhead on big batches


def dqn_forward(x, prepared, *, action_dim, batch_tile=None):
    """x: (B, state_dim) f32. prepared: output of prepare_params(). Returns (B, action_dim) f32."""
    B, state_dim = x.shape
    out_dim = prepared["w4p"].shape[1]

    if batch_tile is None:
        batch_tile = _pick_batch_tile(B)
    num_tiles = pl.cdiv(B, batch_tile)
    Bp = num_tiles * batch_tile
    # Pad ragged batches instead of collapsing to one giant tile.
    x_in = x if Bp == B else jnp.pad(x, ((0, Bp - B), (0, 0)))

    def resident(arr):
        # Whole array, constant block index -> DMA'd once, VMEM-resident across steps.
        return pl.BlockSpec(arr.shape, lambda i: (0,) * arr.ndim)

    w1, b1 = prepared["w1"], prepared["b1"]
    w2, b2 = prepared["w2"], prepared["b2"]
    w3, b3 = prepared["w3"], prepared["b3"]
    w4p, b4p = prepared["w4p"], prepared["b4p"]

    flops = 2 * Bp * (state_dim * w1.shape[1] + w2.shape[0] * w2.shape[1]
                      + w3.shape[0] * w3.shape[1] + w4p.shape[0] * out_dim)
    bytes_accessed = (int(x_in.size) * x_in.dtype.itemsize + Bp * out_dim * 4
                      + sum(int(a.size) * a.dtype.itemsize
                            for a in (w1, b1, w2, b2, w3, b3, w4p, b4p)))

    out_padded = pl.pallas_call(
        dqn_kernel,
        out_shape=jax.ShapeDtypeStruct((Bp, out_dim), jnp.float32),
        grid_spec=pltpu.PrefetchScalarGridSpec(
            num_scalar_prefetch=0,
            grid=(num_tiles,),
            in_specs=[
                pl.BlockSpec((batch_tile, state_dim), lambda i: (i, 0)),
                resident(w1), resident(b1),
                resident(w2), resident(b2),
                resident(w3), resident(b3),
                resident(w4p), resident(b4p),
            ],
            out_specs=pl.BlockSpec((batch_tile, out_dim), lambda i: (i, 0)),
        ),
        compiler_params=pltpu.CompilerParams(
            dimension_semantics=("parallel",)),
        cost_estimate=pl.CostEstimate(
            flops=flops, transcendentals=0, bytes_accessed=bytes_accessed),
    )(x_in, w1, b1, w2, b2, w3, b3, w4p, b4p)

    # Strip batch padding and the fc4 lane-padding columns.
    return out_padded[:B, :action_dim]


def init_params(key, state_dim, action_dim, hidden_dim=512):
    """Deterministic synthetic parameters matching the PyTorch module's shapes."""
    dims = [(state_dim, hidden_dim), (512, 256), (256, 128), (128, action_dim)]
    params = {}
    for idx, (fan_in, fan_out) in enumerate(dims, start=1):
        key, kw, kb = jax.random.split(key, 3)
        bound = 1.0 / jnp.sqrt(jnp.float32(fan_in))  # PyTorch Linear default init
        params[f"w{idx}"] = jax.random.uniform(
            kw, (fan_in, fan_out), jnp.float32, -bound, bound)
        params[f"b{idx}"] = jax.random.uniform(
            kb, (1, fan_out), jnp.float32, -bound, bound)
    return params


def reference_forward(x, params):
    """Pure-JAX reference with matching numerics: fc1 f32, fc2-4 bf16 operands / f32 accum."""
    h = jnp.maximum(x @ params["w1"] + params["b1"], 0.0)

    def lin(a, w, b):
        return jnp.dot(a.astype(jnp.bfloat16), w.astype(jnp.bfloat16),
                       preferred_element_type=jnp.float32) + b.astype(jnp.float32)

    h = jnp.maximum(lin(h, params["w2"], params["b2"]), 0.0)
    h = jnp.maximum(lin(h, params["w3"], params["b3"]), 0.0)
    return lin(h, params["w4"], params["b4"])


def reference_forward_f32(x, params):
    h = jnp.maximum(x @ params["w1"] + params["b1"], 0.0)
    h = jnp.maximum(h @ params["w2"] + params["b2"], 0.0)
    h = jnp.maximum(h @ params["w3"] + params["b3"], 0.0)
    return h @ params["w4"] + params["b4"]


if __name__ == "__main__":
    key = jax.random.PRNGKey(0)
    state_dim, action_dim, hidden_dim = 4, 2, 512  # Flappy Bird: 4-d state, 2 actions

    kp, kx1, kx2 = jax.random.split(key, 3)
    params = init_params(kp, state_dim, action_dim, hidden_dim)
    prepared = prepare_params(params)  # one-time prep, outside the hot path

    fwd = jax.jit(dqn_forward, static_argnames=("action_dim", "batch_tile"))

    # Small batch (the actual DQN act/step regime): single grid step.
    x_small = jax.random.normal(kx1, (16, state_dim), jnp.float32)
    out_small = jax.block_until_ready(fwd(x_small, prepared, action_dim=action_dim))

    # Medium, non-divisible batch (replay-buffer style): padded, tiled grid.
    x_mid = jax.random.normal(kx2, (300, state_dim), jnp.float32)
    out_mid = jax.block_until_ready(fwd(x_mid, prepared, action_dim=action_dim))

    for x, out in ((x_small, out_small), (x_mid, out_mid)):
        ref_mixed = reference_forward(x, params)
        ref_f32 = reference_forward_f32(x, params)
        assert out.shape == (x.shape[0], action_dim)
        assert jnp.allclose(out, ref_mixed, atol=2e-2, rtol=2e-2), \
            "mismatch vs matched-precision reference"
        assert jnp.allclose(out, ref_f32, atol=5e-2, rtol=5e-2), \
            "mismatch vs f32 reference"

    print("KERNEL_OK")
</pallas_src>

<mosaic_0001>
module attributes {stable_mosaic.version = 11 : i64} {
  func.func @dqn_kernel(%arg0: i32, %arg1: memref<16x4xf32, #tpu.memory_space<vmem>>, %arg2: memref<4x512xf32, #tpu.memory_space<vmem>>, %arg3: memref<1x512xf32, #tpu.memory_space<vmem>>, %arg4: memref<512x256xbf16, #tpu.memory_space<vmem>>, %arg5: memref<1x256xf32, #tpu.memory_space<vmem>>, %arg6: memref<256x128xbf16, #tpu.memory_space<vmem>>, %arg7: memref<1x128xf32, #tpu.memory_space<vmem>>, %arg8: memref<128x128xbf16, #tpu.memory_space<vmem>>, %arg9: memref<1x128xf32, #tpu.memory_space<vmem>>, %arg10: memref<16x128xf32, #tpu.memory_space<vmem>>) attributes {dimension_semantics = [#tpu.dimension_semantics<parallel>], iteration_bounds = array<i64: 1>, scalar_prefetch = 0 : i64, scratch_operands = 0 : i64, tpu.core_type = #tpu.core_type<tc>, window_params = [{transform_indices = @transform_0, window_bounds = array<i64: 16, 4>}, {pipeline_mode = #tpu.pipeline_mode<synchronous>, transform_indices = @transform_1, window_bounds = array<i64: 4, 512>}, {pipeline_mode = #tpu.pipeline_mode<synchronous>, transform_indices = @transform_2, window_bounds = array<i64: 1, 512>}, {pipeline_mode = #tpu.pipeline_mode<synchronous>, transform_indices = @transform_3, window_bounds = array<i64: 512, 256>}, {pipeline_mode = #tpu.pipeline_mode<synchronous>, transform_indices = @transform_4, window_bounds = array<i64: 1, 256>}, {pipeline_mode = #tpu.pipeline_mode<synchronous>, transform_indices = @transform_5, window_bounds = array<i64: 256, 128>}, {pipeline_mode = #tpu.pipeline_mode<synchronous>, transform_indices = @transform_6, window_bounds = array<i64: 1, 128>}, {pipeline_mode = #tpu.pipeline_mode<synchronous>, transform_indices = @transform_7, window_bounds = array<i64: 128, 128>}, {pipeline_mode = #tpu.pipeline_mode<synchronous>, transform_indices = @transform_8, window_bounds = array<i64: 1, 128>}, {transform_indices = @transform_9, window_bounds = array<i64: 16, 128>}]} {
    %c0 = arith.constant 0 : index
    %c0_0 = arith.constant 0 : index
    %0 = vector.load %arg1[%c0, %c0_0] : memref<16x4xf32, #tpu.memory_space<vmem>>, vector<16x4xf32>
    %c0_1 = arith.constant 0 : index
    %c0_2 = arith.constant 0 : index
    %1 = vector.load %arg2[%c0_1, %c0_2] : memref<4x512xf32, #tpu.memory_space<vmem>>, vector<4x512xf32>
    %c0_3 = arith.constant 0 : index
    %c0_4 = arith.constant 0 : index
    %2 = vector.load %arg3[%c0_3, %c0_4] : memref<1x512xf32, #tpu.memory_space<vmem>>, vector<1x512xf32>
    %3 = vector.shape_cast %2 : vector<1x512xf32> to vector<1x512xf32>
    %4 = vector.broadcast %3 : vector<1x512xf32> to vector<16x512xf32>
    %5 = vector.extract_strided_slice %0 {offsets = [0, 0], sizes = [16, 1], strides = [1, 1]} : vector<16x4xf32> to vector<16x1xf32>
    %6 = vector.extract_strided_slice %1 {offsets = [0, 0], sizes = [1, 512], strides = [1, 1]} : vector<4x512xf32> to vector<1x512xf32>
    %7 = vector.broadcast %5 : vector<16x1xf32> to vector<16x512xf32>
    %8 = vector.broadcast %6 : vector<1x512xf32> to vector<16x512xf32>
    %9 = arith.mulf %7, %8 : vector<16x512xf32>
    %10 = arith.addf %4, %9 : vector<16x512xf32>
    %11 = vector.extract_strided_slice %0 {offsets = [0, 1], sizes = [16, 1], strides = [1, 1]} : vector<16x4xf32> to vector<16x1xf32>
    %12 = vector.extract_strided_slice %1 {offsets = [1, 0], sizes = [1, 512], strides = [1, 1]} : vector<4x512xf32> to vector<1x512xf32>
    %13 = vector.broadcast %11 : vector<16x1xf32> to vector<16x512xf32>
    %14 = vector.broadcast %12 : vector<1x512xf32> to vector<16x512xf32>
    %15 = arith.mulf %13, %14 : vector<16x512xf32>
    %16 = arith.addf %10, %15 : vector<16x512xf32>
    %17 = vector.extract_strided_slice %0 {offsets = [0, 2], sizes = [16, 1], strides = [1, 1]} : vector<16x4xf32> to vector<16x1xf32>
    %18 = vector.extract_strided_slice %1 {offsets = [2, 0], sizes = [1, 512], strides = [1, 1]} : vector<4x512xf32> to vector<1x512xf32>
    %19 = vector.broadcast %17 : vector<16x1xf32> to vector<16x512xf32>
    %20 = vector.broadcast %18 : vector<1x512xf32> to vector<16x512xf32>
    %21 = arith.mulf %19, %20 : vector<16x512xf32>
    %22 = arith.addf %16, %21 : vector<16x512xf32>
    %23 = vector.extract_strided_slice %0 {offsets = [0, 3], sizes = [16, 1], strides = [1, 1]} : vector<16x4xf32> to vector<16x1xf32>
    %24 = vector.extract_strided_slice %1 {offsets = [3, 0], sizes = [1, 512], strides = [1, 1]} : vector<4x512xf32> to vector<1x512xf32>
    %25 = vector.broadcast %23 : vector<16x1xf32> to vector<16x512xf32>
    %26 = vector.broadcast %24 : vector<1x512xf32> to vector<16x512xf32>
    %27 = arith.mulf %25, %26 : vector<16x512xf32>
    %28 = arith.addf %22, %27 : vector<16x512xf32>
    %cst = arith.constant 0.000000e+00 : f32
    %29 = vector.broadcast %cst : f32 to vector<16x512xf32>
    %30 = arith.maximumf %28, %29 : vector<16x512xf32>
    %31 = arith.truncf %30 : vector<16x512xf32> to vector<16x512xbf16>
    %c0_5 = arith.constant 0 : index
    %c0_6 = arith.constant 0 : index
    %32 = vector.load %arg4[%c0_5, %c0_6] : memref<512x256xbf16, #tpu.memory_space<vmem>>, vector<512x256xbf16>
    %cst_7 = arith.constant dense<0.000000e+00> : vector<16x256xf32>
    %33 = tpu.matmul %31, %32, %cst_7 {dimension_numbers = #tpu.dot_dimension_numbers<[1], [0], [0], [1], [0, 0, 1, 1], [], []>} : vector<16x512xbf16>, vector<512x256xbf16>, vector<16x256xf32> -> vector<16x256xf32>
    %c0_8 = arith.constant 0 : index
    %c0_9 = arith.constant 0 : index
    %34 = vector.load %arg5[%c0_8, %c0_9] : memref<1x256xf32, #tpu.memory_space<vmem>>, vector<1x256xf32>
    %35 = vector.broadcast %34 : vector<1x256xf32> to vector<16x256xf32>
    %36 = arith.addf %33, %35 : vector<16x256xf32>
    %cst_10 = arith.constant 0.000000e+00 : f32
    %37 = vector.broadcast %cst_10 : f32 to vector<16x256xf32>
    %38 = arith.maximumf %36, %37 : vector<16x256xf32>
    %39 = arith.truncf %38 : vector<16x256xf32> to vector<16x256xbf16>
    %c0_11 = arith.constant 0 : index
    %c0_12 = arith.constant 0 : index
    %40 = vector.load %arg6[%c0_11, %c0_12] : memref<256x128xbf16, #tpu.memory_space<vmem>>, vector<256x128xbf16>
    %cst_13 = arith.constant dense<0.000000e+00> : vector<16x128xf32>
    %41 = tpu.matmul %39, %40, %cst_13 {dimension_numbers = #tpu.dot_dimension_numbers<[1], [0], [0], [1], [0, 0, 1, 1], [], []>} : vector<16x256xbf16>, vector<256x128xbf16>, vector<16x128xf32> -> vector<16x128xf32>
    %c0_14 = arith.constant 0 : index
    %c0_15 = arith.constant 0 : index
    %42 = vector.load %arg7[%c0_14, %c0_15] : memref<1x128xf32, #tpu.memory_space<vmem>>, vector<1x128xf32>
    %43 = vector.broadcast %42 : vector<1x128xf32> to vector<16x128xf32>
    %44 = arith.addf %41, %43 : vector<16x128xf32>
    %cst_16 = arith.constant 0.000000e+00 : f32
    %45 = vector.broadcast %cst_16 : f32 to vector<16x128xf32>
    %46 = arith.maximumf %44, %45 : vector<16x128xf32>
    %47 = arith.truncf %46 : vector<16x128xf32> to vector<16x128xbf16>
    %c0_17 = arith.constant 0 : index
    %c0_18 = arith.constant 0 : index
    %48 = vector.load %arg8[%c0_17, %c0_18] : memref<128x128xbf16, #tpu.memory_space<vmem>>, vector<128x128xbf16>
    %cst_19 = arith.constant dense<0.000000e+00> : vector<16x128xf32>
    %49 = tpu.matmul %47, %48, %cst_19 {dimension_numbers = #tpu.dot_dimension_numbers<[1], [0], [0], [1], [0, 0, 1, 1], [], []>} : vector<16x128xbf16>, vector<128x128xbf16>, vector<16x128xf32> -> vector<16x128xf32>
    %c0_20 = arith.constant 0 : index
    %c0_21 = arith.constant 0 : index
    %50 = vector.load %arg9[%c0_20, %c0_21] : memref<1x128xf32, #tpu.memory_space<vmem>>, vector<1x128xf32>
    %51 = vector.broadcast %50 : vector<1x128xf32> to vector<16x128xf32>
    %52 = arith.addf %49, %51 : vector<16x128xf32>
    %c0_22 = arith.constant 0 : index
    %c0_23 = arith.constant 0 : index
    %53 = vector.load %arg10[%c0_22, %c0_23] : memref<16x128xf32, #tpu.memory_space<vmem>>, vector<16x128xf32>
    tpu.vector_store %arg10[%c0_22, %c0_23], %52 {strides = array<i32>} : memref<16x128xf32, #tpu.memory_space<vmem>>, vector<16x128xf32>,
    return
  }
  func.func @transform_0(%arg0: i32) -> (i32, i32) {
    %c0_i32 = arith.constant 0 : i32
    %c0_i32_0 = arith.constant 0 : i32
    return %arg0, %c0_i32 : i32, i32
  }
  func.func @transform_1(%arg0: i32) -> (i32, i32) {
    %c0_i32 = arith.constant 0 : i32
    %c0_i32_0 = arith.constant 0 : i32
    %c0_i32_1 = arith.constant 0 : i32
    return %c0_i32, %c0_i32_0 : i32, i32
  }
  func.func @transform_2(%arg0: i32) -> (i32, i32) {
    %c0_i32 = arith.constant 0 : i32
    %c0_i32_0 = arith.constant 0 : i32
    %c0_i32_1 = arith.constant 0 : i32
    return %c0_i32, %c0_i32_0 : i32, i32
  }
  func.func @transform_3(%arg0: i32) -> (i32, i32) {
    %c0_i32 = arith.constant 0 : i32
    %c0_i32_0 = arith.constant 0 : i32
    %c0_i32_1 = arith.constant 0 : i32
    return %c0_i32, %c0_i32_0 : i32, i32
  }
  func.func @transform_4(%arg0: i32) -> (i32, i32) {
    %c0_i32 = arith.constant 0 : i32
    %c0_i32_0 = arith.constant 0 : i32
    %c0_i32_1 = arith.constant 0 : i32
    return %c0_i32, %c0_i32_0 : i32, i32
  }
  func.func @transform_5(%arg0: i32) -> (i32, i32) {
    %c0_i32 = arith.constant 0 : i32
    %c0_i32_0 = arith.constant 0 : i32
    %c0_i32_1 = arith.constant 0 : i32
    return %c0_i32, %c0_i32_0 : i32, i32
  }
  func.func @transform_6(%arg0: i32) -> (i32, i32) {
    %c0_i32 = arith.constant 0 : i32
    %c0_i32_0 = arith.constant 0 : i32
    %c0_i32_1 = arith.constant 0 : i32
    return %c0_i32, %c0_i32_0 : i32, i32
  }
  func.func @transform_7(%arg0: i32) -> (i32, i32) {
    %c0_i32 = arith.constant 0 : i32
    %c0_i32_0 = arith.constant 0 : i32
    %c0_i32_1 = arith.constant 0 : i32
    return %c0_i32, %c0_i32_0 : i32, i32
  }
  func.func @transform_8(%arg0: i32) -> (i32, i32) {
    %c0_i32 = arith.constant 0 : i32
    %c0_i32_0 = arith.constant 0 : i32
    %c0_i32_1 = arith.constant 0 : i32
    return %c0_i32, %c0_i32_0 : i32, i32
  }
  func.func @transform_9(%arg0: i32) -> (i32, i32) {
    %c0_i32 = arith.constant 0 : i32
    %c0_i32_0 = arith.constant 0 : i32
    return %arg0, %c0_i32 : i32, i32
  }
}

</mosaic_0001>

<llo_original>
// kernel: dqn_forward.1
$region0: #{dqn_forward.1}
  #allocation0 [shape = 'u32[]', space=smem, size = 0x4, offset = 0x4, fixed_abs, tag = 'smem constant byte address 0x4 - core index']
  #allocation1 [shape = 'u32[144,128]{1,0:T(1,128)}', space=vmem, size = 0x12000, scoped, tag = 'internal scratch']
  %s0 = inlined_call_operand.vmem [shape: f32[16,4], index: 0, kind: input, shape index: {}]
  %s1 = inlined_call_operand.vmem [shape: f32[4,512], index: 1, kind: input, shape index: {}]
  %s2 = inlined_call_operand.vmem [shape: f32[1,512], index: 2, kind: input, shape index: {}]
  %s3 = inlined_call_operand.hbm [shape: bf16[512,256], index: 3, kind: input, shape index: {}]
  %s4 = inlined_call_operand.vmem [shape: f32[1,256], index: 4, kind: input, shape index: {}]
  %s5 = inlined_call_operand.hbm [shape: bf16[256,128], index: 5, kind: input, shape index: {}]
  %s6 = inlined_call_operand.vmem [shape: f32[1,128], index: 6, kind: input, shape index: {}]
  %s7 = inlined_call_operand.hbm [shape: bf16[128,128], index: 7, kind: input, shape index: {}]
  %s8 = inlined_call_operand.vmem [shape: f32[1,128], index: 8, kind: input, shape index: {}]
  %s9 = inlined_call_operand.vmem [shape: f32[16,128], index: 9, kind: output, shape index: {}]
  %s10 = sld [smem:[#allocation0]]
  $region58: #{dqn_forward.1} parent=0
    _
  %s12 = ssub.s32 1, %s10
  %s13 = scalar_select 0, %s12, %s10
  $region1: #{dqn_forward.1} parent=0
    #allocation2 [shape = 'u8[262144]{0}', space=vmem, size = 0x40000, scoped, tag = 'input window, operand 3, single buffered']
    #allocation3 [shape = 's32[1]{0}', space=sflag, size = 0x4, scoped, tag = 'scoped memory for dqn_forward.1']
    #allocation4 [shape = 'u8[65536]{0}', space=vmem, size = 0x10000, scoped, tag = 'input window, operand 5, single buffered']
    #allocation5 [shape = 's32[1]{0}', space=sflag, size = 0x4, scoped, tag = 'scoped memory for dqn_forward.1']
    #allocation6 [shape = 'u8[32768]{0}', space=vmem, size = 0x8000, scoped, tag = 'input window, operand 7, single buffered']
    %14 = vsyncpa [#allocation3], 0
    %15 = vsyncpa [#allocation5], 0
    // Predicated region
    $region2: #{dqn_forward.1} parent=1 // pred_check
      _
    $region3: #{dqn_forward.1} parent=1 // pred_check_branch
      %17 = sbr.rel (0) target = $region5
    $region4: #{dqn_forward.1} parent=1 // pred_region
      _
    $region5: #{dqn_forward.1} parent=1 // pred_fallthru
      _
    // Predicated region
    $region6: #{dqn_forward.1} parent=1 // pred_check
      _
    $region7: #{dqn_forward.1} parent=1 // pred_check_branch
      %19 = sbr.rel (0) target = $region9
    $region8: #{dqn_forward.1} parent=1 // pred_region
      _
    $region9: #{dqn_forward.1} parent=1 // pred_fallthru
      _
    // Predicated region
    $region10: #{dqn_forward.1} parent=1 // pred_check
      _
    $region11: #{dqn_forward.1} parent=1 // pred_check_branch
      %21 = sbr.rel (0) target = $region13
    $region12: #{dqn_forward.1} parent=1 // pred_region
      _
    $region13: #{dqn_forward.1} parent=1 // pred_fallthru
      _
    // Predicated region
    $region14: #{dqn_forward.1} parent=1 // pred_check
      _
    $region15: #{dqn_forward.1} parent=1 // pred_check_branch
      %23 = sbr.rel (0) target = $region17
    $region16: #{dqn_forward.1} parent=1 // pred_region
      %s25 = ssub.s32 8192, 8192
      %26 = vsyncadd [#allocation3], %s25
      %s27 = sshll.u32 [#allocation2], 4
      %s28 = int_to_ptr.vmem [resolvable:$true] %s27
      %33 = dma.hbm_to_vmem [thread:$0]  %s3, 8192, %s28, [#allocation3], 128, 128, 8
    $region17: #{dqn_forward.1} parent=1 // pred_fallthru
      _
    // Predicated region
    $region18: #{dqn_forward.1} parent=1 // pred_check
      _
    $region19: #{dqn_forward.1} parent=1 // pred_check_branch
      %35 = sbr.rel (0) target = $region21
    $region20: #{dqn_forward.1} parent=1 // pred_region
      _
    $region21: #{dqn_forward.1} parent=1 // pred_fallthru
      _
    // Predicated region
    $region22: #{dqn_forward.1} parent=1 // pred_check
      _
    $region23: #{dqn_forward.1} parent=1 // pred_check_branch
      %37 = sbr.rel (0) target = $region25
    $region24: #{dqn_forward.1} parent=1 // pred_region
      %s39 = ssub.s32 2048, 2048
      %40 = vsyncadd [#allocation5], %s39
      %s41 = sshll.u32 [#allocation4], 4
      %s42 = int_to_ptr.vmem [resolvable:$true] %s41
      %47 = dma.hbm_to_vmem [thread:$0]  %s5, 2048, %s42, [#allocation5], 64, 64, 4
    $region25: #{dqn_forward.1} parent=1 // pred_fallthru
      _
    // Predicated region
    $region26: #{dqn_forward.1} parent=1 // pred_check
      _
    $region27: #{dqn_forward.1} parent=1 // pred_check_branch
      %49 = sbr.rel (0) target = $region29
    $region28: #{dqn_forward.1} parent=1 // pred_region
      _
    $region29: #{dqn_forward.1} parent=1 // pred_fallthru
      _
    // Predicated region
    $region30: #{dqn_forward.1} parent=1 // pred_check
      _
    $region31: #{dqn_forward.1} parent=1 // pred_check_branch
      %51 = sbr.rel (0) target = $region33
    $region32: #{dqn_forward.1} parent=1 // pred_region
      %s53 = ssub.s32 1024, 1024
      %54 = vsyncadd [#allocation5], %s53
      %s55 = sshll.u32 [#allocation6], 4
      %s56 = int_to_ptr.vmem [resolvable:$true] %s55
      %61 = dma.hbm_to_vmem [thread:$0]  %s7, 1024, %s56, [#allocation5], 64, 64, 4
    $region33: #{dqn_forward.1} parent=1 // pred_fallthru
      _
    // Predicated region
    $region34: #{dqn_forward.1} parent=1 // pred_check
      _
    $region35: #{dqn_forward.1} parent=1 // pred_check_branch
      %63 = sbr.rel (0) target = $region37
    $region36: #{dqn_forward.1} parent=1 // pred_region
      _
    $region37: #{dqn_forward.1} parent=1 // pred_fallthru
      _
    // Predicated region
    $region38: #{dqn_forward.1} parent=1 // pred_check
      _
    $region39: #{dqn_forward.1} parent=1 // pred_check_branch
      %65 = sbr.rel (0) target = $region41
    $region40: #{dqn_forward.1} parent=1 // pred_region
      %66 = dma.done [#allocation3], 8192
    $region41: #{dqn_forward.1} parent=1 // pred_fallthru
      _
    // Predicated region
    $region42: #{dqn_forward.1} parent=1 // pred_check
      _
    $region43: #{dqn_forward.1} parent=1 // pred_check_branch
      %68 = sbr.rel (0) target = $region45
    $region44: #{dqn_forward.1} parent=1 // pred_region
      %69 = dma.done [#allocation5], 2048
    $region45: #{dqn_forward.1} parent=1 // pred_fallthru
      _
    // Predicated region
    $region46: #{dqn_forward.1} parent=1 // pred_check
      _
    $region47: #{dqn_forward.1} parent=1 // pred_check_branch
      %71 = sbr.rel (0) target = $region49
    $region48: #{dqn_forward.1} parent=1 // pred_region
      %72 = dma.done [#allocation5], 1024
    $region49: #{dqn_forward.1} parent=1 // pred_fallthru
      _
    %v74 = vld [vmem:[%s0] sm:$0xff]
    %v75 = vld [vmem:[%s0 + $0x8] sm:$0xff]
    %v76 = vld [vmem:[%s1] sm:$0xff]
    %v77 = vld [vmem:[%s1 + $0x8] sm:$0xff]
    %v78 = vld [vmem:[%s2] sm:$0xf]
    %v80 = vlaneseq
    %v81 = vshrl.u32 %v80, 7
    %v82 = vsub.s32 0, %v81
    %v83 = vrot.slane %v78, %v82
    %v84 = vlaneseq
    %v85 = vshrl.u32 %v84, 7
    %v86 = vsub.s32 1, %v85
    %v87 = vrot.slane %v78, %v86
    %v88 = vlaneseq
    %v89 = vshrl.u32 %v88, 7
    %v90 = vsub.s32 2, %v89
    %v91 = vrot.slane %v78, %v90
    %v92 = vlaneseq
    %v93 = vshrl.u32 %v92, 7
    %v94 = vsub.s32 3, %v93
    %v95 = vrot.slane %v78, %v94
    %101 = vset.pattern.permute.xlu0 0
    %102 = vperm.xlu0 %101, %v74
    %v103 = vpop.permute.xlu0 %102
    %106 = vset.pattern.permute.xlu0 0
    %107 = vperm.xlu0 %106, %v75
    %v108 = vpop.permute.xlu0 %107
    %v112 = vlaneseq
    %v113 = vshrl.u32 %v112, 7
    %v114 = vsub.s32 0, %v113
    %v115 = vrot.slane %v76, %v114
    %v116 = vlaneseq
    %v117 = vshrl.u32 %v116, 7
    %v118 = vsub.s32 4, %v117
    %v119 = vrot.slane %v76, %v118
    %v120 = vlaneseq
    %v121 = vshrl.u32 %v120, 7
    %v122 = vsub.s32 0, %v121
    %v123 = vrot.slane %v77, %v122
    %v124 = vlaneseq
    %v125 = vshrl.u32 %v124, 7
    %v126 = vsub.s32 4, %v125
    %v127 = vrot.slane %v77, %v126
    %v132 = vlaneseq
    %v133 = vshrl.u32 %v132, 7
    %v134 = vsub.s32 0, %v133
    %v135 = vrot.slane %v115, %v134
    %v136 = vlaneseq
    %v137 = vshrl.u32 %v136, 7
    %v138 = vsub.s32 0, %v137
    %v139 = vrot.slane %v119, %v138
    %v140 = vlaneseq
    %v141 = vshrl.u32 %v140, 7
    %v142 = vsub.s32 0, %v141
    %v143 = vrot.slane %v123, %v142
    %v144 = vlaneseq
    %v145 = vshrl.u32 %v144, 7
    %v146 = vsub.s32 0, %v145
    %v147 = vrot.slane %v127, %v146
    %v148 = vmul.f32 %v103, %v135
    %v149 = vmul.f32 %v103, %v139
    %v150 = vmul.f32 %v103, %v143
    %v151 = vmul.f32 %v103, %v147
    %v152 = vmul.f32 %v108, %v135
    %v153 = vmul.f32 %v108, %v139
    %v154 = vmul.f32 %v108, %v143
    %v155 = vmul.f32 %v108, %v147
    %v156 = vadd.f32 %v83, %v148
    %v157 = vadd.f32 %v87, %v149
    %v158 = vadd.f32 %v91, %v150
    %v159 = vadd.f32 %v95, %v151
    %v160 = vadd.f32 %v83, %v152
    %v161 = vadd.f32 %v87, %v153
    %v162 = vadd.f32 %v91, %v154
    %v163 = vadd.f32 %v95, %v155
    %164 = vset.pattern.permute.xlu0 1
    %165 = vperm.xlu0 %164, %v74
    %v166 = vpop.permute.xlu0 %165
    %168 = vset.pattern.permute.xlu0 1
    %169 = vperm.xlu0 %168, %v75
    %v170 = vpop.permute.xlu0 %169
    %v172 = vlaneseq
    %v173 = vshrl.u32 %v172, 7
    %v174 = vsub.s32 1, %v173
    %v175 = vrot.slane %v76, %v174
    %v176 = vlaneseq
    %v177 = vshrl.u32 %v176, 7
    %v178 = vsub.s32 5, %v177
    %v179 = vrot.slane %v76, %v178
    %v180 = vlaneseq
    %v181 = vshrl.u32 %v180, 7
    %v182 = vsub.s32 1, %v181
    %v183 = vrot.slane %v77, %v182
    %v184 = vlaneseq
    %v185 = vshrl.u32 %v184, 7
    %v186 = vsub.s32 5, %v185
    %v187 = vrot.slane %v77, %v186
    %v192 = vlaneseq
    %v193 = vshrl.u32 %v192, 7
    %v194 = vsub.s32 1, %v193
    %v195 = vrot.slane %v175, %v194
    %v196 = vlaneseq
    %v197 = vshrl.u32 %v196, 7
    %v198 = vsub.s32 1, %v197
    %v199 = vrot.slane %v179, %v198
    %v200 = vlaneseq
    %v201 = vshrl.u32 %v200, 7
    %v202 = vsub.s32 1, %v201
    %v203 = vrot.slane %v183, %v202
    %v204 = vlaneseq
    %v205 = vshrl.u32 %v204, 7
    %v206 = vsub.s32 1, %v205
    %v207 = vrot.slane %v187, %v206
    %v208 = vmul.f32 %v166, %v195
    %v209 = vmul.f32 %v166, %v199
    %v210 = vmul.f32 %v166, %v203
    %v211 = vmul.f32 %v166, %v207
    %v212 = vmul.f32 %v170, %v195
    %v213 = vmul.f32 %v170, %v199
    %v214 = vmul.f32 %v170, %v203
    %v215 = vmul.f32 %v170, %v207
    %v216 = vadd.f32 %v156, %v208
    %v217 = vadd.f32 %v157, %v209
    %v218 = vadd.f32 %v158, %v210
    %v219 = vadd.f32 %v159, %v211
    %v220 = vadd.f32 %v160, %v212
    %v221 = vadd.f32 %v161, %v213
    %v222 = vadd.f32 %v162, %v214
    %v223 = vadd.f32 %v163, %v215
    %224 = vset.pattern.permute.xlu0 2
    %225 = vperm.xlu0 %224, %v74
    %v226 = vpop.permute.xlu0 %225
    %228 = vset.pattern.permute.xlu0 2
    %229 = vperm.xlu0 %228, %v75
    %v230 = vpop.permute.xlu0 %229
    %v232 = vlaneseq
    %v233 = vshrl.u32 %v232, 7
    %v234 = vsub.s32 2, %v233
    %v235 = vrot.slane %v76, %v234
    %v236 = vlaneseq
    %v237 = vshrl.u32 %v236, 7
    %v238 = vsub.s32 6, %v237
    %v239 = vrot.slane %v76, %v238
    %v240 = vlaneseq
    %v241 = vshrl.u32 %v240, 7
    %v242 = vsub.s32 2, %v241
    %v243 = vrot.slane %v77, %v242
    %v244 = vlaneseq
    %v245 = vshrl.u32 %v244, 7
    %v246 = vsub.s32 6, %v245
    %v247 = vrot.slane %v77, %v246
    %v252 = vlaneseq
    %v253 = vshrl.u32 %v252, 7
    %v254 = vsub.s32 2, %v253
    %v255 = vrot.slane %v235, %v254
    %v256 = vlaneseq
    %v257 = vshrl.u32 %v256, 7
    %v258 = vsub.s32 2, %v257
    %v259 = vrot.slane %v239, %v258
    %v260 = vlaneseq
    %v261 = vshrl.u32 %v260, 7
    %v262 = vsub.s32 2, %v261
    %v263 = vrot.slane %v243, %v262
    %v264 = vlaneseq
    %v265 = vshrl.u32 %v264, 7
    %v266 = vsub.s32 2, %v265
    %v267 = vrot.slane %v247, %v266
    %v268 = vmul.f32 %v226, %v255
    %v269 = vmul.f32 %v226, %v259
    %v270 = vmul.f32 %v226, %v263
    %v271 = vmul.f32 %v226, %v267
    %v272 = vmul.f32 %v230, %v255
    %v273 = vmul.f32 %v230, %v259
    %v274 = vmul.f32 %v230, %v263
    %v275 = vmul.f32 %v230, %v267
    %v276 = vadd.f32 %v216, %v268
    %v277 = vadd.f32 %v217, %v269
    %v278 = vadd.f32 %v218, %v270
    %v279 = vadd.f32 %v219, %v271
    %v280 = vadd.f32 %v220, %v272
    %v281 = vadd.f32 %v221, %v273
    %v282 = vadd.f32 %v222, %v274
    %v283 = vadd.f32 %v223, %v275
    %284 = vset.pattern.permute.xlu0 3
    %285 = vperm.xlu0 %284, %v74
    %v286 = vpop.permute.xlu0 %285
    %288 = vset.pattern.permute.xlu0 3
    %289 = vperm.xlu0 %288, %v75
    %v290 = vpop.permute.xlu0 %289
    %v292 = vlaneseq
    %v293 = vshrl.u32 %v292, 7
    %v294 = vsub.s32 3, %v293
    %v295 = vrot.slane %v76, %v294
    %v296 = vlaneseq
    %v297 = vshrl.u32 %v296, 7
    %v298 = vsub.s32 7, %v297
    %v299 = vrot.slane %v76, %v298
    %v300 = vlaneseq
    %v301 = vshrl.u32 %v300, 7
    %v302 = vsub.s32 3, %v301
    %v303 = vrot.slane %v77, %v302
    %v304 = vlaneseq
    %v305 = vshrl.u32 %v304, 7
    %v306 = vsub.s32 7, %v305
    %v307 = vrot.slane %v77, %v306
    %v312 = vlaneseq
    %v313 = vshrl.u32 %v312, 7
    %v314 = vsub.s32 3, %v313
    %v315 = vrot.slane %v295, %v314
    %v316 = vlaneseq
    %v317 = vshrl.u32 %v316, 7
    %v318 = vsub.s32 3, %v317
    %v319 = vrot.slane %v299, %v318
    %v320 = vlaneseq
    %v321 = vshrl.u32 %v320, 7
    %v322 = vsub.s32 3, %v321
    %v323 = vrot.slane %v303, %v322
    %v324 = vlaneseq
    %v325 = vshrl.u32 %v324, 7
    %v326 = vsub.s32 3, %v325
    %v327 = vrot.slane %v307, %v326
    %v328 = vmul.f32 %v286, %v315
    %v329 = vmul.f32 %v286, %v319
    %v330 = vmul.f32 %v286, %v323
    %v331 = vmul.f32 %v286, %v327
    %v332 = vmul.f32 %v290, %v315
    %v333 = vmul.f32 %v290, %v319
    %v334 = vmul.f32 %v290, %v323
    %v335 = vmul.f32 %v290, %v327
    %v336 = vadd.f32 %v276, %v328
    %v337 = vadd.f32 %v277, %v329
    %v338 = vadd.f32 %v278, %v330
    %v339 = vadd.f32 %v279, %v331
    %v340 = vadd.f32 %v280, %v332
    %v341 = vadd.f32 %v281, %v333
    %v342 = vadd.f32 %v282, %v334
    %v343 = vadd.f32 %v283, %v335
    %v344 = vmax.f32 %v336, 0.0
    %v345 = vmax.f32 %v337, 0.0
    %v346 = vmax.f32 %v338, 0.0
    %v347 = vmax.f32 %v339, 0.0
    %v348 = vmax.f32 %v340, 0.0
    %v349 = vmax.f32 %v341, 0.0
    %v350 = vmax.f32 %v342, 0.0
    %v351 = vmax.f32 %v343, 0.0
    %v352 = vpack.c.bf16 %v348, %v344
    %v353 = vpack.c.bf16 %v349, %v345
    %v354 = vpack.c.bf16 %v350, %v346
    %v355 = vpack.c.bf16 %v351, %v347
    %v356 = vld [vmem:[#allocation2] sm:$0xff]
    %v357 = vld [vmem:[#allocation2 + $0x8] sm:$0xff]
    %v358 = vld [vmem:[#allocation2 + $0x10] sm:$0xff]
    %v359 = vld [vmem:[#allocation2 + $0x18] sm:$0xff]
    %v360 = vld [vmem:[#allocation2 + $0x20] sm:$0xff]
    %v361 = vld [vmem:[#allocation2 + $0x28] sm:$0xff]
    %v362 = vld [vmem:[#allocation2 + $0x30] sm:$0xff]
    %v363 = vld [vmem:[#allocation2 + $0x38] sm:$0xff]
    %v364 = vld [vmem:[#allocation2 + $0x40] sm:$0xff]
    %v365 = vld [vmem:[#allocation2 + $0x48] sm:$0xff]
    %v366 = vld [vmem:[#allocation2 + $0x50] sm:$0xff]
    %v367 = vld [vmem:[#allocation2 + $0x58] sm:$0xff]
    %v368 = vld [vmem:[#allocation2 + $0x60] sm:$0xff]
    %v369 = vld [vmem:[#allocation2 + $0x68] sm:$0xff]
    %v370 = vld [vmem:[#allocation2 + $0x70] sm:$0xff]
    %v371 = vld [vmem:[#allocation2 + $0x78] sm:$0xff]
    %v372 = vld [vmem:[#allocation2 + $0x80] sm:$0xff]
    %v373 = vld [vmem:[#allocation2 + $0x88] sm:$0xff]
    %v374 = vld [vmem:[#allocation2 + $0x90] sm:$0xff]
    %v375 = vld [vmem:[#allocation2 + $0x98] sm:$0xff]
    %v376 = vld [vmem:[#allocation2 + $0xa0] sm:$0xff]
    %v377 = vld [vmem:[#allocation2 + $0xa8] sm:$0xff]
    %v378 = vld [vmem:[#allocation2 + $0xb0] sm:$0xff]
    %v379 = vld [vmem:[#allocation2 + $0xb8] sm:$0xff]
    %v380 = vld [vmem:[#allocation2 + $0xc0] sm:$0xff]
    %v381 = vld [vmem:[#allocation2 + $0xc8] sm:$0xff]
    %v382 = vld [vmem:[#allocation2 + $0xd0] sm:$0xff]
    %v383 = vld [vmem:[#allocation2 + $0xd8] sm:$0xff]
    %v384 = vld [vmem:[#allocation2 + $0xe0] sm:$0xff]
    %v385 = vld [vmem:[#allocation2 + $0xe8] sm:$0xff]
    %v386 = vld [vmem:[#allocation2 + $0xf0] sm:$0xff]
    %v387 = vld [vmem:[#allocation2 + $0xf8] sm:$0xff]
    %v388 = vld [vmem:[#allocation2 + $0x100] sm:$0xff]
    %v389 = vld [vmem:[#allocation2 + $0x108] sm:$0xff]
    %v390 = vld [vmem:[#allocation2 + $0x110] sm:$0xff]
    %v391 = vld [vmem:[#allocation2 + $0x118] sm:$0xff]
    %v392 = vld [vmem:[#allocation2 + $0x120] sm:$0xff]
    %v393 = vld [vmem:[#allocation2 + $0x128] sm:$0xff]
    %v394 = vld [vmem:[#allocation2 + $0x130] sm:$0xff]
    %v395 = vld [vmem:[#allocation2 + $0x138] sm:$0xff]
    %v396 = vld [vmem:[#allocation2 + $0x140] sm:$0xff]
    %v397 = vld [vmem:[#allocation2 + $0x148] sm:$0xff]
    %v398 = vld [vmem:[#allocation2 + $0x150] sm:$0xff]
    %v399 = vld [vmem:[#allocation2 + $0x158] sm:$0xff]
    %v400 = vld [vmem:[#allocation2 + $0x160] sm:$0xff]
    %v401 = vld [vmem:[#allocation2 + $0x168] sm:$0xff]
    %v402 = vld [vmem:[#allocation2 + $0x170] sm:$0xff]
    %v403 = vld [vmem:[#allocation2 + $0x178] sm:$0xff]
    %v404 = vld [vmem:[#allocation2 + $0x180] sm:$0xff]
    %v405 = vld [vmem:[#allocation2 + $0x188] sm:$0xff]
    %v406 = vld [vmem:[#allocation2 + $0x190] sm:$0xff]
    %v407 = vld [vmem:[#allocation2 + $0x198] sm:$0xff]
    %v408 = vld [vmem:[#allocation2 + $0x1a0] sm:$0xff]
    %v409 = vld [vmem:[#allocation2 + $0x1a8] sm:$0xff]
    %v410 = vld [vmem:[#allocation2 + $0x1b0] sm:$0xff]
    %v411 = vld [vmem:[#allocation2 + $0x1b8] sm:$0xff]
    %v412 = vld [vmem:[#allocation2 + $0x1c0] sm:$0xff]
    %v413 = vld [vmem:[#allocation2 + $0x1c8] sm:$0xff]
    %v414 = vld [vmem:[#allocation2 + $0x1d0] sm:$0xff]
    %v415 = vld [vmem:[#allocation2 + $0x1d8] sm:$0xff]
    %v416 = vld [vmem:[#allocation2 + $0x1e0] sm:$0xff]
    %v417 = vld [vmem:[#allocation2 + $0x1e8] sm:$0xff]
    %v418 = vld [vmem:[#allocation2 + $0x1f0] sm:$0xff]
    %v419 = vld [vmem:[#allocation2 + $0x1f8] sm:$0xff]
    %v420 = vld [vmem:[%s4] sm:$0x3]
    %v422 = vlaneseq
    %v423 = vshrl.u32 %v422, 7
    %v424 = vsub.s32 0, %v423
    %v425 = vrot.slane %v420, %v424
    %v426 = vlaneseq
    %v427 = vshrl.u32 %v426, 7
    %v428 = vsub.s32 1, %v427
    %v429 = vrot.slane %v420, %v428
    %v496 = vunpack.c.l.b16 %v356
    %v497 = vunpack.c.h.b16 %v356
    %v498 = vunpack.c.l.b16 %v357
    %v499 = vunpack.c.h.b16 %v357
    %v500 = vunpack.c.l.b16 %v358
    %v501 = vunpack.c.h.b16 %v358
    %v502 = vunpack.c.l.b16 %v359
    %v503 = vunpack.c.h.b16 %v359
    %v504 = vunpack.c.l.b16 %v360
    %v505 = vunpack.c.h.b16 %v360
    %v506 = vunpack.c.l.b16 %v361
    %v507 = vunpack.c.h.b16 %v361
    %v508 = vunpack.c.l.b16 %v362
    %v509 = vunpack.c.h.b16 %v362
    %v510 = vunpack.c.l.b16 %v363
    %v511 = vunpack.c.h.b16 %v363
    %v512 = vunpack.c.l.b16 %v364
    %v513 = vunpack.c.h.b16 %v364
    %v514 = vunpack.c.l.b16 %v365
    %v515 = vunpack.c.h.b16 %v365
    %v516 = vunpack.c.l.b16 %v366
    %v517 = vunpack.c.h.b16 %v366
    %v518 = vunpack.c.l.b16 %v367
    %v519 = vunpack.c.h.b16 %v367
    %v520 = vunpack.c.l.b16 %v368
    %v521 = vunpack.c.h.b16 %v368
    %v522 = vunpack.c.l.b16 %v369
    %v523 = vunpack.c.h.b16 %v369
    %v524 = vunpack.c.l.b16 %v370
    %v525 = vunpack.c.h.b16 %v370
    %v526 = vunpack.c.l.b16 %v371
    %v527 = vunpack.c.h.b16 %v371
    %v528 = vunpack.c.l.b16 %v372
    %v529 = vunpack.c.h.b16 %v372
    %v530 = vunpack.c.l.b16 %v373
    %v531 = vunpack.c.h.b16 %v373
    %v532 = vunpack.c.l.b16 %v374
    %v533 = vunpack.c.h.b16 %v374
    %v534 = vunpack.c.l.b16 %v375
    %v535 = vunpack.c.h.b16 %v375
    %v536 = vunpack.c.l.b16 %v376
    %v537 = vunpack.c.h.b16 %v376
    %v538 = vunpack.c.l.b16 %v377
    %v539 = vunpack.c.h.b16 %v377
    %v540 = vunpack.c.l.b16 %v378
    %v541 = vunpack.c.h.b16 %v378
    %v542 = vunpack.c.l.b16 %v379
    %v543 = vunpack.c.h.b16 %v379
    %v544 = vunpack.c.l.b16 %v380
    %v545 = vunpack.c.h.b16 %v380
    %v546 = vunpack.c.l.b16 %v381
    %v547 = vunpack.c.h.b16 %v381
    %v548 = vunpack.c.l.b16 %v382
    %v549 = vunpack.c.h.b16 %v382
    %v550 = vunpack.c.l.b16 %v383
    %v551 = vunpack.c.h.b16 %v383
    %v552 = vunpack.c.l.b16 %v384
    %v553 = vunpack.c.h.b16 %v384
    %v554 = vunpack.c.l.b16 %v385
    %v555 = vunpack.c.h.b16 %v385
    %v556 = vunpack.c.l.b16 %v386
    %v557 = vunpack.c.h.b16 %v386
    %v558 = vunpack.c.l.b16 %v387
    %v559 = vunpack.c.h.b16 %v387
    %v560 = vunpack.c.l.b16 %v388
    %v561 = vunpack.c.h.b16 %v388
    %v562 = vunpack.c.l.b16 %v389
    %v563 = vunpack.c.h.b16 %v389
    %v564 = vunpack.c.l.b16 %v390
    %v565 = vunpack.c.h.b16 %v390
    %v566 = vunpack.c.l.b16 %v391
    %v567 = vunpack.c.h.b16 %v391
    %v568 = vunpack.c.l.b16 %v392
    %v569 = vunpack.c.h.b16 %v392
    %v570 = vunpack.c.l.b16 %v393
    %v571 = vunpack.c.h.b16 %v393
    %v572 = vunpack.c.l.b16 %v394
    %v573 = vunpack.c.h.b16 %v394
    %v574 = vunpack.c.l.b16 %v395
    %v575 = vunpack.c.h.b16 %v395
    %v576 = vunpack.c.l.b16 %v396
    %v577 = vunpack.c.h.b16 %v396
    %v578 = vunpack.c.l.b16 %v397
    %v579 = vunpack.c.h.b16 %v397
    %v580 = vunpack.c.l.b16 %v398
    %v581 = vunpack.c.h.b16 %v398
    %v582 = vunpack.c.l.b16 %v399
    %v583 = vunpack.c.h.b16 %v399
    %v584 = vunpack.c.l.b16 %v400
    %v585 = vunpack.c.h.b16 %v400
    %v586 = vunpack.c.l.b16 %v401
    %v587 = vunpack.c.h.b16 %v401
    %v588 = vunpack.c.l.b16 %v402
    %v589 = vunpack.c.h.b16 %v402
    %v590 = vunpack.c.l.b16 %v403
    %v591 = vunpack.c.h.b16 %v403
    %v592 = vunpack.c.l.b16 %v404
    %v593 = vunpack.c.h.b16 %v404
    %v594 = vunpack.c.l.b16 %v405
    %v595 = vunpack.c.h.b16 %v405
    %v596 = vunpack.c.l.b16 %v406
    %v597 = vunpack.c.h.b16 %v406
    %v598 = vunpack.c.l.b16 %v407
    %v599 = vunpack.c.h.b16 %v407
    %v600 = vunpack.c.l.b16 %v408
    %v601 = vunpack.c.h.b16 %v408
    %v602 = vunpack.c.l.b16 %v409
    %v603 = vunpack.c.h.b16 %v409
    %v604 = vunpack.c.l.b16 %v410
    %v605 = vunpack.c.h.b16 %v410
    %v606 = vunpack.c.l.b16 %v411
    %v607 = vunpack.c.h.b16 %v411
    %v608 = vunpack.c.l.b16 %v412
    %v609 = vunpack.c.h.b16 %v412
    %v610 = vunpack.c.l.b16 %v413
    %v611 = vunpack.c.h.b16 %v413
    %v612 = vunpack.c.l.b16 %v414
    %v613 = vunpack.c.h.b16 %v414
    %v614 = vunpack.c.l.b16 %v415
    %v615 = vunpack.c.h.b16 %v415
    %v616 = vunpack.c.l.b16 %v416
    %v617 = vunpack.c.h.b16 %v416
    %v618 = vunpack.c.l.b16 %v417
    %v619 = vunpack.c.h.b16 %v417
    %v620 = vunpack.c.l.b16 %v418
    %v621 = vunpack.c.h.b16 %v418
    %v622 = vunpack.c.l.b16 %v419
    %v623 = vunpack.c.h.b16 %v419
    %v624 = vpack.c.b16 %v498, %v496
    %v625 = vpack.c.b16 %v499, %v497
    %v626 = vpack.c.b16 %v502, %v500
    %v627 = vpack.c.b16 %v503, %v501
    %v628 = vpack.c.b16 %v506, %v504
    %v629 = vpack.c.b16 %v507, %v505
    %v630 = vpack.c.b16 %v510, %v508
    %v631 = vpack.c.b16 %v511, %v509
    %v632 = vpack.c.b16 %v514, %v512
    %v633 = vpack.c.b16 %v515, %v513
    %v634 = vpack.c.b16 %v518, %v516
    %v635 = vpack.c.b16 %v519, %v517
    %v636 = vpack.c.b16 %v522, %v520
    %v637 = vpack.c.b16 %v523, %v521
    %v638 = vpack.c.b16 %v526, %v524
    %v639 = vpack.c.b16 %v527, %v525
    %v640 = vpack.c.b16 %v530, %v528
    %v641 = vpack.c.b16 %v531, %v529
    %v642 = vpack.c.b16 %v534, %v532
    %v643 = vpack.c.b16 %v535, %v533
    %v644 = vpack.c.b16 %v538, %v536
    %v645 = vpack.c.b16 %v539, %v537
    %v646 = vpack.c.b16 %v542, %v540
    %v647 = vpack.c.b16 %v543, %v541
    %v648 = vpack.c.b16 %v546, %v544
    %v649 = vpack.c.b16 %v547, %v545
    %v650 = vpack.c.b16 %v550, %v548
    %v651 = vpack.c.b16 %v551, %v549
    %v652 = vpack.c.b16 %v554, %v552
    %v653 = vpack.c.b16 %v555, %v553
    %v654 = vpack.c.b16 %v558, %v556
    %v655 = vpack.c.b16 %v559, %v557
    %v656 = vpack.c.b16 %v562, %v560
    %v657 = vpack.c.b16 %v563, %v561
    %v658 = vpack.c.b16 %v566, %v564
    %v659 = vpack.c.b16 %v567, %v565
    %v660 = vpack.c.b16 %v570, %v568
    %v661 = vpack.c.b16 %v571, %v569
    %v662 = vpack.c.b16 %v574, %v572
    %v663 = vpack.c.b16 %v575, %v573
    %v664 = vpack.c.b16 %v578, %v576
    %v665 = vpack.c.b16 %v579, %v577
    %v666 = vpack.c.b16 %v582, %v580
    %v667 = vpack.c.b16 %v583, %v581
    %v668 = vpack.c.b16 %v586, %v584
    %v669 = vpack.c.b16 %v587, %v585
    %v670 = vpack.c.b16 %v590, %v588
    %v671 = vpack.c.b16 %v591, %v589
    %v672 = vpack.c.b16 %v594, %v592
    %v673 = vpack.c.b16 %v595, %v593
    %v674 = vpack.c.b16 %v598, %v596
    %v675 = vpack.c.b16 %v599, %v597
    %v676 = vpack.c.b16 %v602, %v600
    %v677 = vpack.c.b16 %v603, %v601
    %v678 = vpack.c.b16 %v606, %v604
    %v679 = vpack.c.b16 %v607, %v605
    %v680 = vpack.c.b16 %v610, %v608
    %v681 = vpack.c.b16 %v611, %v609
    %v682 = vpack.c.b16 %v614, %v612
    %v683 = vpack.c.b16 %v615, %v613
    %v684 = vpack.c.b16 %v618, %v616
    %v685 = vpack.c.b16 %v619, %v617
    %v686 = vpack.c.b16 %v622, %v620
    %v687 = vpack.c.b16 %v623, %v621
    %752 = vmatprep.subr.bf16.mxu0 %v639
    %753 = vmatpush1.bf16.msra.mxu0 %v638
    %754 = vmatprep.subr.bf16.mxu0 %v637
    %755 = vmatpush1.bf16.msra.mxu0 %v636
    %756 = vmatprep.subr.bf16.mxu0 %v635
    %757 = vmatpush1.bf16.msra.mxu0 %v634
    %758 = vmatprep.subr.bf16.mxu0 %v633
    %759 = vmatpush1.bf16.msra.mxu0 %v632
    %760 = vmatprep.subr.bf16.mxu0 %v631
    %761 = vmatpush1.bf16.msra.mxu0 %v630
    %762 = vmatprep.subr.bf16.mxu0 %v629
    %763 = vmatpush1.bf16.msra.mxu0 %v628
    %764 = vmatprep.subr.bf16.mxu0 %v627
    %765 = vmatpush1.bf16.msra.mxu0 %v626
    %766 = vmatprep.subr.bf16.mxu0 %v625
    %767 = vmatpush1.bf16.msra.mxu0 %v624
    %768 = vmatprep.subr.bf16.mxu0 %v655
    %769 = vmatpush2.bf16.msra.mxu0 %v654
    %770 = vmatprep.subr.bf16.mxu0 %v653
    %771 = vmatpush2.bf16.msra.mxu0 %v652
    %772 = vmatprep.subr.bf16.mxu0 %v651
    %773 = vmatpush2.bf16.msra.mxu0 %v650
    %774 = vmatprep.subr.bf16.mxu0 %v649
    %775 = vmatpush2.bf16.msra.mxu0 %v648
    %776 = vmatprep.subr.bf16.mxu0 %v647
    %777 = vmatpush2.bf16.msra.mxu0 %v646
    %778 = vmatprep.subr.bf16.mxu0 %v645
    %779 = vmatpush2.bf16.msra.mxu0 %v644
    %780 = vmatprep.subr.bf16.mxu0 %v643
    %781 = vmatpush2.bf16.msra.mxu0 %v642
    %782 = vmatprep.subr.bf16.mxu0 %v641
    %783 = vmatpush2.bf16.msra.mxu0 %v640
    %784 = vmatprep.mubr.bf16.mxu0 %v353
    %785 = vmatmul.mubr.bf16.gmra.mxu0 %v352
    %v786 = vpop.f32.mrf.mxu0
    %v787 = vadd.f32 %v425, %v786
    %v788 = vpop.f32.mrf.mxu0
    %v789 = vadd.f32 %v429, %v788
    %v790 = vpop.f32.mrf.mxu0
    %v791 = vadd.f32 %v425, %v790
    %v792 = vpop.f32.mrf.mxu0
    %v793 = vadd.f32 %v429, %v792
    %794 = vdwg.mxu0
    %795 = vmatprep.subr.bf16.mxu0 %v671
    %796 = vmatpush1.bf16.msra.mxu0 %v670
    %797 = vmatprep.subr.bf16.mxu0 %v669
    %798 = vmatpush1.bf16.msra.mxu0 %v668
    %799 = vmatprep.subr.bf16.mxu0 %v667
    %800 = vmatpush1.bf16.msra.mxu0 %v666
    %801 = vmatprep.subr.bf16.mxu0 %v665
    %802 = vmatpush1.bf16.msra.mxu0 %v664
    %803 = vmatprep.subr.bf16.mxu0 %v663
    %804 = vmatpush1.bf16.msra.mxu0 %v662
    %805 = vmatprep.subr.bf16.mxu0 %v661
    %806 = vmatpush1.bf16.msra.mxu0 %v660
    %807 = vmatprep.subr.bf16.mxu0 %v659
    %808 = vmatpush1.bf16.msra.mxu0 %v658
    %809 = vmatprep.subr.bf16.mxu0 %v657
    %810 = vmatpush1.bf16.msra.mxu0 %v656
    %811 = vmatprep.subr.bf16.mxu0 %v687
    %812 = vmatpush2.bf16.msra.mxu0 %v686
    %813 = vmatprep.subr.bf16.mxu0 %v685
    %814 = vmatpush2.bf16.msra.mxu0 %v684
    %815 = vmatprep.subr.bf16.mxu0 %v683
    %816 = vmatpush2.bf16.msra.mxu0 %v682
    %817 = vmatprep.subr.bf16.mxu0 %v681
    %818 = vmatpush2.bf16.msra.mxu0 %v680
    %819 = vmatprep.subr.bf16.mxu0 %v679
    %820 = vmatpush2.bf16.msra.mxu0 %v678
    %821 = vmatprep.subr.bf16.mxu0 %v677
    %822 = vmatpush2.bf16.msra.mxu0 %v676
    %823 = vmatprep.subr.bf16.mxu0 %v675
    %824 = vmatpush2.bf16.msra.mxu0 %v674
    %825 = vmatprep.subr.bf16.mxu0 %v673
    %826 = vmatpush2.bf16.msra.mxu0 %v672
    %827 = vmatprep.mubr.bf16.mxu0 %v355
    %828 = vmatmul.mubr.bf16.gmra.mxu0 %v354
    %v829 = vpop.f32.mrf.mxu0
    %v830 = vadd.f32 %v787, %v829
    %v831 = vpop.f32.mrf.mxu0
    %v832 = vadd.f32 %v789, %v831
    %v833 = vpop.f32.mrf.mxu0
    %v834 = vadd.f32 %v791, %v833
    %v835 = vpop.f32.mrf.mxu0
    %v836 = vadd.f32 %v793, %v835
    %837 = vdwg.mxu0
    %v838 = vmax.f32 %v830, 0.0
    %v839 = vmax.f32 %v832, 0.0
    %v840 = vmax.f32 %v834, 0.0
    %v841 = vmax.f32 %v836, 0.0
    %v842 = vpack.c.bf16 %v840, %v838
    %v843 = vpack.c.bf16 %v841, %v839
    %v844 = vld [vmem:[#allocation4] sm:$0xf]
    %v845 = vld [vmem:[#allocation4 + $0x4] sm:$0xf]
    %v846 = vld [vmem:[#allocation4 + $0x8] sm:$0xf]
    %v847 = vld [vmem:[#allocation4 + $0xc] sm:$0xf]
    %v848 = vld [vmem:[#allocation4 + $0x10] sm:$0xf]
    %v849 = vld [vmem:[#allocation4 + $0x14] sm:$0xf]
    %v850 = vld [vmem:[#allocation4 + $0x18] sm:$0xf]
    %v851 = vld [vmem:[#allocation4 + $0x1c] sm:$0xf]
    %v852 = vld [vmem:[#allocation4 + $0x20] sm:$0xf]
    %v853 = vld [vmem:[#allocation4 + $0x24] sm:$0xf]
    %v854 = vld [vmem:[#allocation4 + $0x28] sm:$0xf]
    %v855 = vld [vmem:[#allocation4 + $0x2c] sm:$0xf]
    %v856 = vld [vmem:[#allocation4 + $0x30] sm:$0xf]
    %v857 = vld [vmem:[#allocation4 + $0x34] sm:$0xf]
    %v858 = vld [vmem:[#allocation4 + $0x38] sm:$0xf]
    %v859 = vld [vmem:[#allocation4 + $0x3c] sm:$0xf]
    %v860 = vld [vmem:[#allocation4 + $0x40] sm:$0xf]
    %v861 = vld [vmem:[#allocation4 + $0x44] sm:$0xf]
    %v862 = vld [vmem:[#allocation4 + $0x48] sm:$0xf]
    %v863 = vld [vmem:[#allocation4 + $0x4c] sm:$0xf]
    %v864 = vld [vmem:[#allocation4 + $0x50] sm:$0xf]
    %v865 = vld [vmem:[#allocation4 + $0x54] sm:$0xf]
    %v866 = vld [vmem:[#allocation4 + $0x58] sm:$0xf]
    %v867 = vld [vmem:[#allocation4 + $0x5c] sm:$0xf]
    %v868 = vld [vmem:[#allocation4 + $0x60] sm:$0xf]
    %v869 = vld [vmem:[#allocation4 + $0x64] sm:$0xf]
    %v870 = vld [vmem:[#allocation4 + $0x68] sm:$0xf]
    %v871 = vld [vmem:[#allocation4 + $0x6c] sm:$0xf]
    %v872 = vld [vmem:[#allocation4 + $0x70] sm:$0xf]
    %v873 = vld [vmem:[#allocation4 + $0x74] sm:$0xf]
    %v874 = vld [vmem:[#allocation4 + $0x78] sm:$0xf]
    %v875 = vld [vmem:[#allocation4 + $0x7c] sm:$0xf]
    %v876 = vld [vmem:[%s6] sm:$0x1]
    %v878 = vlaneseq
    %v879 = vshrl.u32 %v878, 7
    %v880 = vsub.s32 0, %v879
    %v881 = vrot.slane %v876, %v880
    %v915 = vunpack.c.l.b16 %v844
    %v916 = vunpack.c.l.b16 %v845
    %v917 = vunpack.c.l.b16 %v846
    %v918 = vunpack.c.l.b16 %v847
    %v919 = vunpack.c.l.b16 %v848
    %v920 = vunpack.c.l.b16 %v849
    %v921 = vunpack.c.l.b16 %v850
    %v922 = vunpack.c.l.b16 %v851
    %v923 = vunpack.c.l.b16 %v852
    %v924 = vunpack.c.l.b16 %v853
    %v925 = vunpack.c.l.b16 %v854
    %v926 = vunpack.c.l.b16 %v855
    %v927 = vunpack.c.l.b16 %v856
    %v928 = vunpack.c.l.b16 %v857
    %v929 = vunpack.c.l.b16 %v858
    %v930 = vunpack.c.l.b16 %v859
    %v931 = vunpack.c.l.b16 %v860
    %v932 = vunpack.c.l.b16 %v861
    %v933 = vunpack.c.l.b16 %v862
    %v934 = vunpack.c.l.b16 %v863
    %v935 = vunpack.c.l.b16 %v864
    %v936 = vunpack.c.l.b16 %v865
    %v937 = vunpack.c.l.b16 %v866
    %v938 = vunpack.c.l.b16 %v867
    %v939 = vunpack.c.l.b16 %v868
    %v940 = vunpack.c.l.b16 %v869
    %v941 = vunpack.c.l.b16 %v870
    %v942 = vunpack.c.l.b16 %v871
    %v943 = vunpack.c.l.b16 %v872
    %v944 = vunpack.c.l.b16 %v873
    %v945 = vunpack.c.l.b16 %v874
    %v946 = vunpack.c.l.b16 %v875
    %v947 = vpack.c.b16 %v916, %v915
    %v948 = vpack.c.b16 %v918, %v917
    %v949 = vpack.c.b16 %v920, %v919
    %v950 = vpack.c.b16 %v922, %v921
    %v951 = vpack.c.b16 %v924, %v923
    %v952 = vpack.c.b16 %v926, %v925
    %v953 = vpack.c.b16 %v928, %v927
    %v954 = vpack.c.b16 %v930, %v929
    %v955 = vpack.c.b16 %v932, %v931
    %v956 = vpack.c.b16 %v934, %v933
    %v957 = vpack.c.b16 %v936, %v935
    %v958 = vpack.c.b16 %v938, %v937
    %v959 = vpack.c.b16 %v940, %v939
    %v960 = vpack.c.b16 %v942, %v941
    %v961 = vpack.c.b16 %v944, %v943
    %v962 = vpack.c.b16 %v946, %v945
    %979 = vmatprep.subr.bf16.mxu0 0
    %980 = vmatpush1.bf16.msra.mxu0 %v954
    %981 = vmatprep.subr.bf16.mxu0 0
    %982 = vmatpush1.bf16.msra.mxu0 %v953
    %983 = vmatprep.subr.bf16.mxu0 0
    %984 = vmatpush1.bf16.msra.mxu0 %v952
    %985 = vmatprep.subr.bf16.mxu0 0
    %986 = vmatpush1.bf16.msra.mxu0 %v951
    %987 = vmatprep.subr.bf16.mxu0 0
    %988 = vmatpush1.bf16.msra.mxu0 %v950
    %989 = vmatprep.subr.bf16.mxu0 0
    %990 = vmatpush1.bf16.msra.mxu0 %v949
    %991 = vmatprep.subr.bf16.mxu0 0
    %992 = vmatpush1.bf16.msra.mxu0 %v948
    %993 = vmatprep.subr.bf16.mxu0 0
    %994 = vmatpush1.bf16.msra.mxu0 %v947
    %995 = vmatprep.subr.bf16.mxu0 0
    %996 = vmatpush2.bf16.msra.mxu0 %v962
    %997 = vmatprep.subr.bf16.mxu0 0
    %998 = vmatpush2.bf16.msra.mxu0 %v961
    %999 = vmatprep.subr.bf16.mxu0 0
    %1000 = vmatpush2.bf16.msra.mxu0 %v960
    %1001 = vmatprep.subr.bf16.mxu0 0
    %1002 = vmatpush2.bf16.msra.mxu0 %v959
    %1003 = vmatprep.subr.bf16.mxu0 0
    %1004 = vmatpush2.bf16.msra.mxu0 %v958
    %1005 = vmatprep.subr.bf16.mxu0 0
    %1006 = vmatpush2.bf16.msra.mxu0 %v957
    %1007 = vmatprep.subr.bf16.mxu0 0
    %1008 = vmatpush2.bf16.msra.mxu0 %v956
    %1009 = vmatprep.subr.bf16.mxu0 0
    %1010 = vmatpush2.bf16.msra.mxu0 %v955
    %1011 = vmatprep.mubr.bf16.mxu0 %v843
    %1012 = vmatmul.mubr.bf16.gmra.mxu0 %v842
    %v1013 = vpop.f32.mrf.mxu0
    %v1014 = vadd.f32 %v881, %v1013
    %v1015 = vpop.f32.mrf.mxu0
    %v1016 = vpop.f32.mrf.mxu0
    %v1017 = vadd.f32 %v881, %v1016
    %v1018 = vpop.f32.mrf.mxu0
    %1019 = vdwg.mxu0
    %v1020 = vmax.f32 %v1014, 0.0
    %v1021 = vmax.f32 %v1017, 0.0
    %v1022 = vpack.c.bf16 %v1021, %v1020
    %v1023 = vld [vmem:[#allocation6] sm:$0xf]
    %v1024 = vld [vmem:[#allocation6 + $0x4] sm:$0xf]
    %v1025 = vld [vmem:[#allocation6 + $0x8] sm:$0xf]
    %v1026 = vld [vmem:[#allocation6 + $0xc] sm:$0xf]
    %v1027 = vld [vmem:[#allocation6 + $0x10] sm:$0xf]
    %v1028 = vld [vmem:[#allocation6 + $0x14] sm:$0xf]
    %v1029 = vld [vmem:[#allocation6 + $0x18] sm:$0xf]
    %v1030 = vld [vmem:[#allocation6 + $0x1c] sm:$0xf]
    %v1031 = vld [vmem:[#allocation6 + $0x20] sm:$0xf]
    %v1032 = vld [vmem:[#allocation6 + $0x24] sm:$0xf]
    %v1033 = vld [vmem:[#allocation6 + $0x28] sm:$0xf]
    %v1034 = vld [vmem:[#allocation6 + $0x2c] sm:$0xf]
    %v1035 = vld [vmem:[#allocation6 + $0x30] sm:$0xf]
    %v1036 = vld [vmem:[#allocation6 + $0x34] sm:$0xf]
    %v1037 = vld [vmem:[#allocation6 + $0x38] sm:$0xf]
    %v1038 = vld [vmem:[#allocation6 + $0x3c] sm:$0xf]
    %v1039 = vld [vmem:[%s8] sm:$0x1]
    %v1041 = vlaneseq
    %v1042 = vshrl.u32 %v1041, 7
    %v1043 = vsub.s32 0, %v1042
    %v1044 = vrot.slane %v1039, %v1043
    %v1062 = vunpack.c.l.b16 %v1023
    %v1063 = vunpack.c.l.b16 %v1024
    %v1064 = vunpack.c.l.b16 %v1025
    %v1065 = vunpack.c.l.b16 %v1026
    %v1066 = vunpack.c.l.b16 %v1027
    %v1067 = vunpack.c.l.b16 %v1028
    %v1068 = vunpack.c.l.b16 %v1029
    %v1069 = vunpack.c.l.b16 %v1030
    %v1070 = vunpack.c.l.b16 %v1031
    %v1071 = vunpack.c.l.b16 %v1032
    %v1072 = vunpack.c.l.b16 %v1033
    %v1073 = vunpack.c.l.b16 %v1034
    %v1074 = vunpack.c.l.b16 %v1035
    %v1075 = vunpack.c.l.b16 %v1036
    %v1076 = vunpack.c.l.b16 %v1037
    %v1077 = vunpack.c.l.b16 %v1038
    %v1078 = vpack.c.b16 %v1063, %v1062
    %v1079 = vpack.c.b16 %v1065, %v1064
    %v1080 = vpack.c.b16 %v1067, %v1066
    %v1081 = vpack.c.b16 %v1069, %v1068
    %v1082 = vpack.c.b16 %v1071, %v1070
    %v1083 = vpack.c.b16 %v1073, %v1072
    %v1084 = vpack.c.b16 %v1075, %v1074
    %v1085 = vpack.c.b16 %v1077, %v1076
    %1094 = vmatprep.subr.bf16.mxu0 0
    %1095 = vmatpush1.bf16.msra.mxu0 %v1085
    %1096 = vmatprep.subr.bf16.mxu0 0
    %1097 = vmatpush1.bf16.msra.mxu0 %v1084
    %1098 = vmatprep.subr.bf16.mxu0 0
    %1099 = vmatpush1.bf16.msra.mxu0 %v1083
    %1100 = vmatprep.subr.bf16.mxu0 0
    %1101 = vmatpush1.bf16.msra.mxu0 %v1082
    %1102 = vmatprep.subr.bf16.mxu0 0
    %1103 = vmatpush1.bf16.msra.mxu0 %v1081
    %1104 = vmatprep.subr.bf16.mxu0 0
    %1105 = vmatpush1.bf16.msra.mxu0 %v1080
    %1106 = vmatprep.subr.bf16.mxu0 0
    %1107 = vmatpush1.bf16.msra.mxu0 %v1079
    %1108 = vmatprep.subr.bf16.mxu0 0
    %1109 = vmatpush1.bf16.msra.mxu0 %v1078
    %1110 = vmatprep.subr.bf16.mxu0 0
    %1111 = vmatpush2.bf16.msra.mxu0 0
    %1112 = vmatprep.subr.bf16.mxu0 0
    %1113 = vmatpush2.bf16.msra.mxu0 0
    %1114 = vmatprep.subr.bf16.mxu0 0
    %1115 = vmatpush2.bf16.msra.mxu0 0
    %1116 = vmatprep.subr.bf16.mxu0 0
    %1117 = vmatpush2.bf16.msra.mxu0 0
    %1118 = vmatprep.subr.bf16.mxu0 0
    %1119 = vmatpush2.bf16.msra.mxu0 0
    %1120 = vmatprep.subr.bf16.mxu0 0
    %1121 = vmatpush2.bf16.msra.mxu0 0
    %1122 = vmatprep.subr.bf16.mxu0 0
    %1123 = vmatpush2.bf16.msra.mxu0 0
    %1124 = vmatprep.subr.bf16.mxu0 0
    %1125 = vmatpush2.bf16.msra.mxu0 0
    %1126 = vmatprep.mubr.bf16.mxu0 0
    %1127 = vmatmul.mubr.bf16.gmra.mxu0 %v1022
    %v1128 = vpop.f32.mrf.mxu0
    %v1129 = vadd.f32 %v1044, %v1128
    %v1130 = vpop.f32.mrf.mxu0
    %v1131 = vpop.f32.mrf.mxu0
    %v1132 = vadd.f32 %v1044, %v1131
    %v1133 = vpop.f32.mrf.mxu0
    %1134 = vdwg.mxu0
    %1135 = vst [vmem:[%s9] sm:$0xff] %v1129
    %1136 = vst [vmem:[%s9 + $0x8] sm:$0xff] %v1132
    // Predicated region
    $region50: #{dqn_forward.1} parent=1 // pred_check
      _
    $region51: #{dqn_forward.1} parent=1 // pred_check_branch
      %1138 = sbr.rel (0) target = $region53
    $region52: #{dqn_forward.1} parent=1 // pred_region
      _
    $region53: #{dqn_forward.1} parent=1 // pred_fallthru
      _
    // Predicated region
    $region54: #{dqn_forward.1} parent=1 // pred_check
      _
    $region55: #{dqn_forward.1} parent=1 // pred_check_branch
      %1140 = sbr.rel (0) target = $region57
    $region56: #{dqn_forward.1} parent=1 // pred_region
      _
    $region57: #{dqn_forward.1} parent=1 // pred_fallthru
      _
    %1141 = vsyncpa [#allocation3], 1
    %1142 = vsyncpa [#allocation5], 1

</llo_original>
